<compile_context>
chip_gen: v7x
topology: tpu7x:2x2x1
jax: 0.10.0
libtpu: 0.0.40
codegen_flags: <defaults>
</compile_context>

<pallas_src>
import jax
import jax.numpy as jnp
from jax.experimental import pallas as pl
from jax.experimental.pallas import tpu as pltpu


def value_model_kernel(x_ref, w1_ref, b1_ref, w2_ref, b2_ref, w3_ref, b3_ref,
                       o_ref):
    # x_ref: (ob_space, TB); w1: (h1, ob_space); b1: (h1, 1)
    h = jnp.dot(w1_ref[...], x_ref[...],
                preferred_element_type=jnp.float32) + b1_ref[...]
    h = jnp.maximum(h, 0.0)                       # ReLU (VPU)
    h = jnp.dot(w2_ref[...], h,
                preferred_element_type=jnp.float32) + b2_ref[...]
    h = jnp.tanh(h)                               # Tanh (EUP)
    v = jnp.dot(w3_ref[...], h,
                preferred_element_type=jnp.float32) + b3_ref[...]
    o_ref[...] = v.astype(o_ref.dtype)            # (1, TB): lane-dense store


def value_model_forward(x, w1, b1, w2, b2, w3, b3, *, batch_tile=128):
    """x: (B, ob_space) float32.
    w1: (h1, ob_space), b1: (h1, 1), w2: (h2, h1), b2: (h2, 1),
    w3: (1, h2), b3: (1, 1)  -- PyTorch nn.Linear (out, in) layout.
    Returns (B, 1)."""
    B, ob_space = x.shape
    TB = batch_tile
    n_tiles = pl.cdiv(B, TB)
    Bp = n_tiles * TB

    # Feature-major, batch padded up to a multiple of the lane tile.
    x_t = jnp.zeros((ob_space, Bp), jnp.float32).at[:, :B].set(x.T)

    out_t = pl.pallas_call(
        value_model_kernel,
        out_shape=jax.ShapeDtypeStruct((1, Bp), jnp.float32),
        grid_spec=pltpu.PrefetchScalarGridSpec(
            num_scalar_prefetch=0,
            grid=(n_tiles,),
            in_specs=[
                # Stream batch tiles of x; B (lanes) is the tiled axis.
                pl.BlockSpec((ob_space, TB), lambda i: (0, i)),
                # Tiny weights/biases: whole-array blocks, constant index_map
                # -> resident in VMEM across all grid steps.
                pl.BlockSpec(w1.shape, lambda i: (0, 0)),
                pl.BlockSpec(b1.shape, lambda i: (0, 0)),
                pl.BlockSpec(w2.shape, lambda i: (0, 0)),
                pl.BlockSpec(b2.shape, lambda i: (0, 0)),
                pl.BlockSpec(w3.shape, lambda i: (0, 0)),
                pl.BlockSpec(b3.shape, lambda i: (0, 0)),
            ],
            out_specs=pl.BlockSpec((1, TB), lambda i: (0, i)),
        ),
        compiler_params=pltpu.CompilerParams(
            dimension_semantics=("parallel",)),  # batch is embarrassingly parallel
    )(x_t, w1, b1, w2, b2, w3, b3)

    return out_t[:, :B].T  # (B, 1)


def _reference(x, w1, b1, w2, b2, w3, b3):
    h = jnp.maximum(x @ w1.T + b1.T, 0.0)
    h = jnp.tanh(h @ w2.T + b2.T)
    return h @ w3.T + b3.T


if __name__ == "__main__":
    # Small shapes consistent with ValueModel(ob_space, h1, h2)
    batch, ob_space, hidden_1, hidden_2 = 8, 4, 32, 16

    key = jax.random.PRNGKey(0)
    k1, k2, k3, k4, k5, k6, kx, kx2 = jax.random.split(key, 8)

    # Parameters in PyTorch nn.Linear layout: W (out, in), b stored as (out, 1).
    w1 = jax.random.normal(k1, (hidden_1, ob_space), jnp.float32) * 0.1
    b1 = jax.random.normal(k2, (hidden_1, 1), jnp.float32) * 0.1
    w2 = jax.random.normal(k3, (hidden_2, hidden_1), jnp.float32) * 0.1
    b2 = jax.random.normal(k4, (hidden_2, 1), jnp.float32) * 0.1
    w3 = jax.random.normal(k5, (1, hidden_2), jnp.float32) * 0.1
    b3 = jax.random.normal(k6, (1, 1), jnp.float32) * 0.1

    # Case 1: tiny batch (exercises the padding path, single grid step).
    x = jax.random.normal(kx, (batch, ob_space), jnp.float32)
    out = jax.block_until_ready(value_model_forward(x, w1, b1, w2, b2, w3, b3))
    ref = _reference(x, w1, b1, w2, b2, w3, b3)
    assert out.shape == (batch, 1)
    assert jnp.allclose(out, ref, atol=1e-5, rtol=1e-5), "mismatch vs reference (B=8)"

    # Case 2: multi-tile batch (exercises the parallel batch grid).
    x2 = jax.random.normal(kx2, (256, ob_space), jnp.float32)
    out2 = jax.block_until_ready(value_model_forward(x2, w1, b1, w2, b2, w3, b3))
    ref2 = _reference(x2, w1, b1, w2, b2, w3, b3)
    assert out2.shape == (256, 1)
    assert jnp.allclose(out2, ref2, atol=1e-5, rtol=1e-5), "mismatch vs reference (B=256)"

    print("KERNEL_OK")
</pallas_src>

<mosaic_0001>
module attributes {stable_mosaic.version = 11 : i64} {
  func.func @value_model_kernel(%arg0: i32, %arg1: memref<4x128xf32, #tpu.memory_space<vmem>>, %arg2: memref<32x4xf32, #tpu.memory_space<vmem>>, %arg3: memref<32x1xf32, #tpu.memory_space<vmem>>, %arg4: memref<16x32xf32, #tpu.memory_space<vmem>>, %arg5: memref<16x1xf32, #tpu.memory_space<vmem>>, %arg6: memref<1x16xf32, #tpu.memory_space<vmem>>, %arg7: memref<1x1xf32, #tpu.memory_space<vmem>>, %arg8: memref<1x128xf32, #tpu.memory_space<vmem>>) attributes {dimension_semantics = [#tpu.dimension_semantics<parallel>], iteration_bounds = array<i64: 1>, scalar_prefetch = 0 : i64, scratch_operands = 0 : i64, tpu.core_type = #tpu.core_type<tc>, window_params = [{transform_indices = @transform_0, window_bounds = array<i64: 4, 128>}, {pipeline_mode = #tpu.pipeline_mode<synchronous>, transform_indices = @transform_1, window_bounds = array<i64: 32, 4>}, {pipeline_mode = #tpu.pipeline_mode<synchronous>, transform_indices = @transform_2, window_bounds = array<i64: 32, 1>}, {pipeline_mode = #tpu.pipeline_mode<synchronous>, transform_indices = @transform_3, window_bounds = array<i64: 16, 32>}, {pipeline_mode = #tpu.pipeline_mode<synchronous>, transform_indices = @transform_4, window_bounds = array<i64: 16, 1>}, {pipeline_mode = #tpu.pipeline_mode<synchronous>, transform_indices = @transform_5, window_bounds = array<i64: 1, 16>}, {pipeline_mode = #tpu.pipeline_mode<synchronous>, transform_indices = @transform_6, window_bounds = array<i64: 1, 1>}, {transform_indices = @transform_7, window_bounds = array<i64: 1, 128>}]} {
    %c0 = arith.constant 0 : index
    %c0_0 = arith.constant 0 : index
    %0 = vector.load %arg2[%c0, %c0_0] : memref<32x4xf32, #tpu.memory_space<vmem>>, vector<32x4xf32>
    %c0_1 = arith.constant 0 : index
    %c0_2 = arith.constant 0 : index
    %1 = vector.load %arg1[%c0_1, %c0_2] : memref<4x128xf32, #tpu.memory_space<vmem>>, vector<4x128xf32>
    %cst = arith.constant dense<0.000000e+00> : vector<32x128xf32>
    %2 = tpu.matmul %0, %1, %cst {dimension_numbers = #tpu.dot_dimension_numbers<[1], [0], [0], [1], [0, 0, 1, 1], [], []>} : vector<32x4xf32>, vector<4x128xf32>, vector<32x128xf32> -> vector<32x128xf32>
    %c0_3 = arith.constant 0 : index
    %c0_4 = arith.constant 0 : index
    %3 = vector.load %arg3[%c0_3, %c0_4] : memref<32x1xf32, #tpu.memory_space<vmem>>, vector<32x1xf32>
    %4 = vector.broadcast %3 : vector<32x1xf32> to vector<32x128xf32>
    %5 = arith.addf %2, %4 : vector<32x128xf32>
    %cst_5 = arith.constant 0.000000e+00 : f32
    %6 = vector.broadcast %cst_5 : f32 to vector<32x128xf32>
    %7 = arith.maximumf %5, %6 : vector<32x128xf32>
    %c0_6 = arith.constant 0 : index
    %c0_7 = arith.constant 0 : index
    %8 = vector.load %arg4[%c0_6, %c0_7] : memref<16x32xf32, #tpu.memory_space<vmem>>, vector<16x32xf32>
    %cst_8 = arith.constant dense<0.000000e+00> : vector<16x128xf32>
    %9 = tpu.matmul %8, %7, %cst_8 {dimension_numbers = #tpu.dot_dimension_numbers<[1], [0], [0], [1], [0, 0, 1, 1], [], []>} : vector<16x32xf32>, vector<32x128xf32>, vector<16x128xf32> -> vector<16x128xf32>
    %c0_9 = arith.constant 0 : index
    %c0_10 = arith.constant 0 : index
    %10 = vector.load %arg5[%c0_9, %c0_10] : memref<16x1xf32, #tpu.memory_space<vmem>>, vector<16x1xf32>
    %11 = vector.broadcast %10 : vector<16x1xf32> to vector<16x128xf32>
    %12 = arith.addf %9, %11 : vector<16x128xf32>
    %13 = math.tanh %12 : vector<16x128xf32>
    %c0_11 = arith.constant 0 : index
    %c0_12 = arith.constant 0 : index
    %14 = vector.load %arg6[%c0_11, %c0_12] : memref<1x16xf32, #tpu.memory_space<vmem>>, vector<1x16xf32>
    %cst_13 = arith.constant dense<0.000000e+00> : vector<1x128xf32>
    %15 = tpu.matmul %14, %13, %cst_13 {dimension_numbers = #tpu.dot_dimension_numbers<[1], [0], [0], [1], [0, 0, 1, 1], [], []>} : vector<1x16xf32>, vector<16x128xf32>, vector<1x128xf32> -> vector<1x128xf32>
    %c0_14 = arith.constant 0 : index
    %c0_15 = arith.constant 0 : index
    %16 = vector.load %arg7[%c0_14, %c0_15] : memref<1x1xf32, #tpu.memory_space<vmem>>, vector<1x1xf32>
    %17 = vector.broadcast %16 : vector<1x1xf32> to vector<1x128xf32>
    %18 = arith.addf %15, %17 : vector<1x128xf32>
    %c0_16 = arith.constant 0 : index
    %c0_17 = arith.constant 0 : index
    %19 = vector.load %arg8[%c0_16, %c0_17] : memref<1x128xf32, #tpu.memory_space<vmem>>, vector<1x128xf32>
    tpu.vector_store %arg8[%c0_16, %c0_17], %18 {strides = array<i32>} : memref<1x128xf32, #tpu.memory_space<vmem>>, vector<1x128xf32>,
    return
  }
  func.func @transform_0(%arg0: i32) -> (i32, i32) {
    %c0_i32 = arith.constant 0 : i32
    %c0_i32_0 = arith.constant 0 : i32
    return %c0_i32, %arg0 : i32, i32
  }
  func.func @transform_1(%arg0: i32) -> (i32, i32) {
    %c0_i32 = arith.constant 0 : i32
    %c0_i32_0 = arith.constant 0 : i32
    %c0_i32_1 = arith.constant 0 : i32
    return %c0_i32, %c0_i32_0 : i32, i32
  }
  func.func @transform_2(%arg0: i32) -> (i32, i32) {
    %c0_i32 = arith.constant 0 : i32
    %c0_i32_0 = arith.constant 0 : i32
    %c0_i32_1 = arith.constant 0 : i32
    return %c0_i32, %c0_i32_0 : i32, i32
  }
  func.func @transform_3(%arg0: i32) -> (i32, i32) {
    %c0_i32 = arith.constant 0 : i32
    %c0_i32_0 = arith.constant 0 : i32
    %c0_i32_1 = arith.constant 0 : i32
    return %c0_i32, %c0_i32_0 : i32, i32
  }
  func.func @transform_4(%arg0: i32) -> (i32, i32) {
    %c0_i32 = arith.constant 0 : i32
    %c0_i32_0 = arith.constant 0 : i32
    %c0_i32_1 = arith.constant 0 : i32
    return %c0_i32, %c0_i32_0 : i32, i32
  }
  func.func @transform_5(%arg0: i32) -> (i32, i32) {
    %c0_i32 = arith.constant 0 : i32
    %c0_i32_0 = arith.constant 0 : i32
    %c0_i32_1 = arith.constant 0 : i32
    return %c0_i32, %c0_i32_0 : i32, i32
  }
  func.func @transform_6(%arg0: i32) -> (i32, i32) {
    %c0_i32 = arith.constant 0 : i32
    %c0_i32_0 = arith.constant 0 : i32
    %c0_i32_1 = arith.constant 0 : i32
    return %c0_i32, %c0_i32_0 : i32, i32
  }
  func.func @transform_7(%arg0: i32) -> (i32, i32) {
    %c0_i32 = arith.constant 0 : i32
    %c0_i32_0 = arith.constant 0 : i32
    return %c0_i32, %arg0 : i32, i32
  }
}

</mosaic_0001>

<llo_original>
// kernel: tpu_custom_call.1
$region0: #{tpu_custom_call.1}
  #allocation0 [shape = 'u32[]', space=smem, size = 0x4, offset = 0x4, fixed_abs, tag = 'smem constant byte address 0x4 - core index']
  #allocation1 [shape = 'u32[144,128]{1,0:T(1,128)}', space=vmem, size = 0x12000, scoped, tag = 'internal scratch']
  #allocation2 [shape = 'f32[1,1]{1,0:T(1,128)S(1)}', space=vmem, size = 0x200, scoped, tag = 'scoped memory for tpu_custom_call.1']
  %s0 = inlined_call_operand.vmem [shape: f32[4,128], index: 0, kind: input, shape index: {}]
  %s1 = inlined_call_operand.vmem [shape: f32[32,4], index: 1, kind: input, shape index: {}]
  %s2 = inlined_call_operand.vmem [shape: f32[32,1], index: 2, kind: input, shape index: {}]
  %s3 = inlined_call_operand.vmem [shape: f32[16,32], index: 3, kind: input, shape index: {}]
  %s4 = inlined_call_operand.vmem [shape: f32[16,1], index: 4, kind: input, shape index: {}]
  %s5 = inlined_call_operand.vmem [shape: f32[1,16], index: 5, kind: input, shape index: {}]
  %s6 = inlined_call_operand.<no memory space> [shape: f32[1,1], index: 6, kind: input, shape index: {}]
  %s7 = inlined_call_operand.hbm [shape: f32[1,128], index: 7, kind: output, shape index: {}]
  %s8 = sld [smem:[#allocation0]]
  $region38: #{tpu_custom_call.1} parent=0
    _
  %s10 = ssub.s32 1, %s8
  %s11 = scalar_select 0, %s10, %s8
  %v12 = vstv %s6
  %13 = vst [vmem:[#allocation2] sm:$0x1] %v12
  $region1: #{tpu_custom_call.1} parent=0
    #allocation3 [shape = 'u8[512]{0}', space=vmem, size = 0x400, scoped, tag = 'output window, operand 0, single buffered']
    #allocation4 [shape = 's32[1]{0}', space=sflag, size = 0x4, scoped, tag = 'scoped memory for tpu_custom_call.1']
    %14 = vsyncpa [#allocation4], 0
    // Predicated region
    $region2: #{tpu_custom_call.1} parent=1 // pred_check
      _
    $region3: #{tpu_custom_call.1} parent=1 // pred_check_branch
      %16 = sbr.rel (0) target = $region5
    $region4: #{tpu_custom_call.1} parent=1 // pred_region
      _
    $region5: #{tpu_custom_call.1} parent=1 // pred_fallthru
      _
    // Predicated region
    $region6: #{tpu_custom_call.1} parent=1 // pred_check
      _
    $region7: #{tpu_custom_call.1} parent=1 // pred_check_branch
      %18 = sbr.rel (0) target = $region9
    $region8: #{tpu_custom_call.1} parent=1 // pred_region
      _
    $region9: #{tpu_custom_call.1} parent=1 // pred_fallthru
      _
    // Predicated region
    $region10: #{tpu_custom_call.1} parent=1 // pred_check
      _
    $region11: #{tpu_custom_call.1} parent=1 // pred_check_branch
      %20 = sbr.rel (0) target = $region13
    $region12: #{tpu_custom_call.1} parent=1 // pred_region
      _
    $region13: #{tpu_custom_call.1} parent=1 // pred_fallthru
      _
    // Predicated region
    $region14: #{tpu_custom_call.1} parent=1 // pred_check
      _
    $region15: #{tpu_custom_call.1} parent=1 // pred_check_branch
      %22 = sbr.rel (0) target = $region17
    $region16: #{tpu_custom_call.1} parent=1 // pred_region
      _
    $region17: #{tpu_custom_call.1} parent=1 // pred_fallthru
      _
    // Predicated region
    $region18: #{tpu_custom_call.1} parent=1 // pred_check
      _
    $region19: #{tpu_custom_call.1} parent=1 // pred_check_branch
      %24 = sbr.rel (0) target = $region21
    $region20: #{tpu_custom_call.1} parent=1 // pred_region
      _
    $region21: #{tpu_custom_call.1} parent=1 // pred_fallthru
      _
    // Predicated region
    $region22: #{tpu_custom_call.1} parent=1 // pred_check
      _
    $region23: #{tpu_custom_call.1} parent=1 // pred_check_branch
      %26 = sbr.rel (0) target = $region25
    $region24: #{tpu_custom_call.1} parent=1 // pred_region
      _
    $region25: #{tpu_custom_call.1} parent=1 // pred_fallthru
      _
    // Predicated region
    $region26: #{tpu_custom_call.1} parent=1 // pred_check
      _
    $region27: #{tpu_custom_call.1} parent=1 // pred_check_branch
      %28 = sbr.rel (0) target = $region29
    $region28: #{tpu_custom_call.1} parent=1 // pred_region
      _
    $region29: #{tpu_custom_call.1} parent=1 // pred_fallthru
      _
    %v29 = vld [vmem:[%s1] sm:$0xff]
    %v30 = vld [vmem:[%s1 + $0x8] sm:$0xff]
    %v31 = vld [vmem:[%s1 + $0x10] sm:$0xff]
    %v32 = vld [vmem:[%s1 + $0x18] sm:$0xff]
    %v33 = vld [vmem:[%s0] sm:$0xf]
    %v34 = vld [vmem:[%s2] sm:$0xff]
    %v35 = vld [vmem:[%s2 + $0x8] sm:$0xff]
    %v36 = vld [vmem:[%s2 + $0x10] sm:$0xff]
    %v37 = vld [vmem:[%s2 + $0x18] sm:$0xff]
    %39 = vset.pattern.permute.xlu0 0
    %40 = vperm.xlu0 %39, %v34
    %v41 = vpop.permute.xlu0 %40
    %44 = vset.pattern.permute.xlu0 0
    %45 = vperm.xlu0 %44, %v35
    %v46 = vpop.permute.xlu0 %45
    %49 = vset.pattern.permute.xlu0 0
    %50 = vperm.xlu0 %49, %v36
    %v51 = vpop.permute.xlu0 %50
    %54 = vset.pattern.permute.xlu0 0
    %55 = vperm.xlu0 %54, %v37
    %v56 = vpop.permute.xlu0 %55
    %vm58 = vcmask 31744
    %v60 = vsel %vm58, %v29, 0
    %v63 = vsel %vm58, %v30, 0
    %v66 = vsel %vm58, %v31, 0
    %v69 = vsel %vm58, %v32, 0
    %vm71 = vcmask 1043456
    %v73 = vsel %vm71, %v33, 0
    %75 = vmatprep.subr.mxu0 0.0
    %76 = vmatpush1.msra.mxu0 %v73
    %77 = vmatprep.subr.mxu0 0.0
    %78 = vmatpush1.msra.mxu0 0.0
    %79 = vmatprep.subr.mxu0 0.0
    %80 = vmatpush1.msra.mxu0 0.0
    %81 = vmatprep.subr.mxu0 0.0
    %82 = vmatpush1.msra.mxu0 0.0
    %83 = vmatprep.subr.mxu0 0.0
    %84 = vmatpush1.msra.mxu0 0.0
    %85 = vmatprep.subr.mxu0 0.0
    %86 = vmatpush1.msra.mxu0 0.0
    %87 = vmatprep.subr.mxu0 0.0
    %88 = vmatpush1.msra.mxu0 0.0
    %89 = vmatprep.subr.mxu0 0.0
    %90 = vmatpush1.msra.mxu0 0.0
    %91 = vmatprep.subr.mxu0 0.0
    %92 = vmatpush1.msra.mxu0 0.0
    %93 = vmatprep.subr.mxu0 0.0
    %94 = vmatpush1.msra.mxu0 0.0
    %95 = vmatprep.subr.mxu0 0.0
    %96 = vmatpush1.msra.mxu0 0.0
    %97 = vmatprep.subr.mxu0 0.0
    %98 = vmatpush1.msra.mxu0 0.0
    %99 = vmatprep.subr.mxu0 0.0
    %100 = vmatpush1.msra.mxu0 0.0
    %101 = vmatprep.subr.mxu0 0.0
    %102 = vmatpush1.msra.mxu0 0.0
    %103 = vmatprep.subr.mxu0 0.0
    %104 = vmatpush1.msra.mxu0 0.0
    %105 = vmatprep.subr.mxu0 0.0
    %106 = vmatpush1.msra.mxu0 0.0
    %107 = vmatprep.subr.mxu0 0.0
    %108 = vmatpush1.msra.mxu0 0.0
    %109 = vmatprep.subr.mxu0 0.0
    %110 = vmatpush1.msra.mxu0 0.0
    %111 = vmatprep.subr.mxu0 0.0
    %112 = vmatpush1.msra.mxu0 0.0
    %113 = vmatprep.subr.mxu0 0.0
    %114 = vmatpush1.msra.mxu0 0.0
    %115 = vmatprep.subr.mxu0 0.0
    %116 = vmatpush1.msra.mxu0 0.0
    %117 = vmatprep.subr.mxu0 0.0
    %118 = vmatpush1.msra.mxu0 0.0
    %119 = vmatprep.subr.mxu0 0.0
    %120 = vmatpush1.msra.mxu0 0.0
    %121 = vmatprep.subr.mxu0 0.0
    %122 = vmatpush1.msra.mxu0 0.0
    %123 = vmatprep.subr.mxu0 0.0
    %124 = vmatpush1.msra.mxu0 0.0
    %125 = vmatprep.subr.mxu0 0.0
    %126 = vmatpush1.msra.mxu0 0.0
    %127 = vmatprep.subr.mxu0 0.0
    %128 = vmatpush1.msra.mxu0 0.0
    %129 = vmatprep.subr.mxu0 0.0
    %130 = vmatpush1.msra.mxu0 0.0
    %131 = vmatprep.subr.mxu0 0.0
    %132 = vmatpush1.msra.mxu0 0.0
    %133 = vmatprep.subr.mxu0 0.0
    %134 = vmatpush1.msra.mxu0 0.0
    %135 = vmatprep.subr.mxu0 0.0
    %136 = vmatpush1.msra.mxu0 0.0
    %137 = vmatprep.subr.mxu0 0.0
    %138 = vmatpush1.msra.mxu0 0.0
    %139 = vmatprep.mubr.f32.mxu0 0.0
    %140 = vmatmul.mubr.f32.gmra.mrb[0].mxu0 %v60
    %v141 = vpop.f32.mrb[0].mxu0
    %v142 = vadd.f32 %v41, %v141
    %v143 = vpop.f32.mrb[0].mxu0
    %144 = vmatprep.mubr.f32.mxu0 0.0
    %145 = vmatmul.mubr.f32.gmra.mrb[0].mxu0 %v63
    %v146 = vpop.f32.mrb[0].mxu0
    %v147 = vadd.f32 %v46, %v146
    %v148 = vpop.f32.mrb[0].mxu0
    %149 = vmatprep.mubr.f32.mxu0 0.0
    %150 = vmatmul.mubr.f32.gmra.mrb[0].mxu0 %v66
    %v151 = vpop.f32.mrb[0].mxu0
    %v152 = vadd.f32 %v51, %v151
    %v153 = vpop.f32.mrb[0].mxu0
    %154 = vmatprep.mubr.f32.mxu0 0.0
    %155 = vmatmul.mubr.f32.gmra.mrb[0].mxu0 %v69
    %v156 = vpop.f32.mrb[0].mxu0
    %v157 = vadd.f32 %v56, %v156
    %v158 = vpop.f32.mrb[0].mxu0
    %159 = vdwg.mxu0
    %v160 = vmax.f32 %v142, 0.0
    %v161 = vmax.f32 %v147, 0.0
    %v162 = vmax.f32 %v152, 0.0
    %v163 = vmax.f32 %v157, 0.0
    %v164 = vld [vmem:[%s3] sm:$0xff]
    %v165 = vld [vmem:[%s3 + $0x8] sm:$0xff]
    %v166 = vld [vmem:[%s4] sm:$0xff]
    %v167 = vld [vmem:[%s4 + $0x8] sm:$0xff]
    %169 = vset.pattern.permute.xlu0 0
    %170 = vperm.xlu0 %169, %v166
    %v171 = vpop.permute.xlu0 %170
    %174 = vset.pattern.permute.xlu0 0
    %175 = vperm.xlu0 %174, %v167
    %v176 = vpop.permute.xlu0 %175
    %vm178 = vcmask 261120
    %v180 = vsel %vm178, %v164, 0
    %v183 = vsel %vm178, %v165, 0
    %185 = vmatprep.subr.mxu0 0.0
    %186 = vmatpush1.msra.mxu0 %v160
    %187 = vmatprep.subr.mxu0 0.0
    %188 = vmatpush1.msra.mxu0 %v161
    %189 = vmatprep.subr.mxu0 0.0
    %190 = vmatpush1.msra.mxu0 %v162
    %191 = vmatprep.subr.mxu0 0.0
    %192 = vmatpush1.msra.mxu0 %v163
    %193 = vmatprep.subr.mxu0 0.0
    %194 = vmatpush1.msra.mxu0 0.0
    %195 = vmatprep.subr.mxu0 0.0
    %196 = vmatpush1.msra.mxu0 0.0
    %197 = vmatprep.subr.mxu0 0.0
    %198 = vmatpush1.msra.mxu0 0.0
    %199 = vmatprep.subr.mxu0 0.0
    %200 = vmatpush1.msra.mxu0 0.0
    %201 = vmatprep.subr.mxu0 0.0
    %202 = vmatpush1.msra.mxu0 0.0
    %203 = vmatprep.subr.mxu0 0.0
    %204 = vmatpush1.msra.mxu0 0.0
    %205 = vmatprep.subr.mxu0 0.0
    %206 = vmatpush1.msra.mxu0 0.0
    %207 = vmatprep.subr.mxu0 0.0
    %208 = vmatpush1.msra.mxu0 0.0
    %209 = vmatprep.subr.mxu0 0.0
    %210 = vmatpush1.msra.mxu0 0.0
    %211 = vmatprep.subr.mxu0 0.0
    %212 = vmatpush1.msra.mxu0 0.0
    %213 = vmatprep.subr.mxu0 0.0
    %214 = vmatpush1.msra.mxu0 0.0
    %215 = vmatprep.subr.mxu0 0.0
    %216 = vmatpush1.msra.mxu0 0.0
    %217 = vmatprep.subr.mxu0 0.0
    %218 = vmatpush1.msra.mxu0 0.0
    %219 = vmatprep.subr.mxu0 0.0
    %220 = vmatpush1.msra.mxu0 0.0
    %221 = vmatprep.subr.mxu0 0.0
    %222 = vmatpush1.msra.mxu0 0.0
    %223 = vmatprep.subr.mxu0 0.0
    %224 = vmatpush1.msra.mxu0 0.0
    %225 = vmatprep.subr.mxu0 0.0
    %226 = vmatpush1.msra.mxu0 0.0
    %227 = vmatprep.subr.mxu0 0.0
    %228 = vmatpush1.msra.mxu0 0.0
    %229 = vmatprep.subr.mxu0 0.0
    %230 = vmatpush1.msra.mxu0 0.0
    %231 = vmatprep.subr.mxu0 0.0
    %232 = vmatpush1.msra.mxu0 0.0
    %233 = vmatprep.subr.mxu0 0.0
    %234 = vmatpush1.msra.mxu0 0.0
    %235 = vmatprep.subr.mxu0 0.0
    %236 = vmatpush1.msra.mxu0 0.0
    %237 = vmatprep.subr.mxu0 0.0
    %238 = vmatpush1.msra.mxu0 0.0
    %239 = vmatprep.subr.mxu0 0.0
    %240 = vmatpush1.msra.mxu0 0.0
    %241 = vmatprep.subr.mxu0 0.0
    %242 = vmatpush1.msra.mxu0 0.0
    %243 = vmatprep.subr.mxu0 0.0
    %244 = vmatpush1.msra.mxu0 0.0
    %245 = vmatprep.subr.mxu0 0.0
    %246 = vmatpush1.msra.mxu0 0.0
    %247 = vmatprep.subr.mxu0 0.0
    %248 = vmatpush1.msra.mxu0 0.0
    %249 = vmatprep.mubr.f32.mxu0 0.0
    %250 = vmatmul.mubr.f32.gmra.mrb[0].mxu0 %v180
    %v251 = vpop.f32.mrb[0].mxu0
    %v252 = vadd.f32 %v171, %v251
    %v253 = vpop.f32.mrb[0].mxu0
    %254 = vmatprep.mubr.f32.mxu0 0.0
    %255 = vmatmul.mubr.f32.gmra.mrb[0].mxu0 %v183
    %v256 = vpop.f32.mrb[0].mxu0
    %v257 = vadd.f32 %v176, %v256
    %v258 = vpop.f32.mrb[0].mxu0
    %259 = vdwg.mxu0
    %v260 = vtanh.pop %v252
    %v261 = vtanh.pop %v257
    %v262 = vld [vmem:[%s5] sm:$0x1]
    %v263 = vld [vmem:[#allocation2] sm:$0x1]
    %265 = vset.pattern.permute.xlu0 0
    %266 = vperm.xlu0 %265, %v263
    %v267 = vpop.permute.xlu0 %266
    %v269 = vlaneseq
    %v270 = vshrl.u32 %v269, 7
    %v271 = vsub.s32 0, %v270
    %v272 = vrot.slane %v267, %v271
    %vm273 = vcmask 130048
    %v275 = vsel %vm273, %v262, 0
    %277 = vmatprep.subr.mxu0 0.0
    %278 = vmatpush1.msra.mxu0 %v260
    %279 = vmatprep.subr.mxu0 0.0
    %280 = vmatpush1.msra.mxu0 %v261
    %281 = vmatprep.subr.mxu0 0.0
    %282 = vmatpush1.msra.mxu0 0.0
    %283 = vmatprep.subr.mxu0 0.0
    %284 = vmatpush1.msra.mxu0 0.0
    %285 = vmatprep.subr.mxu0 0.0
    %286 = vmatpush1.msra.mxu0 0.0
    %287 = vmatprep.subr.mxu0 0.0
    %288 = vmatpush1.msra.mxu0 0.0
    %289 = vmatprep.subr.mxu0 0.0
    %290 = vmatpush1.msra.mxu0 0.0
    %291 = vmatprep.subr.mxu0 0.0
    %292 = vmatpush1.msra.mxu0 0.0
    %293 = vmatprep.subr.mxu0 0.0
    %294 = vmatpush1.msra.mxu0 0.0
    %295 = vmatprep.subr.mxu0 0.0
    %296 = vmatpush1.msra.mxu0 0.0
    %297 = vmatprep.subr.mxu0 0.0
    %298 = vmatpush1.msra.mxu0 0.0
    %299 = vmatprep.subr.mxu0 0.0
    %300 = vmatpush1.msra.mxu0 0.0
    %301 = vmatprep.subr.mxu0 0.0
    %302 = vmatpush1.msra.mxu0 0.0
    %303 = vmatprep.subr.mxu0 0.0
    %304 = vmatpush1.msra.mxu0 0.0
    %305 = vmatprep.subr.mxu0 0.0
    %306 = vmatpush1.msra.mxu0 0.0
    %307 = vmatprep.subr.mxu0 0.0
    %308 = vmatpush1.msra.mxu0 0.0
    %309 = vmatprep.subr.mxu0 0.0
    %310 = vmatpush1.msra.mxu0 0.0
    %311 = vmatprep.subr.mxu0 0.0
    %312 = vmatpush1.msra.mxu0 0.0
    %313 = vmatprep.subr.mxu0 0.0
    %314 = vmatpush1.msra.mxu0 0.0
    %315 = vmatprep.subr.mxu0 0.0
    %316 = vmatpush1.msra.mxu0 0.0
    %317 = vmatprep.subr.mxu0 0.0
    %318 = vmatpush1.msra.mxu0 0.0
    %319 = vmatprep.subr.mxu0 0.0
    %320 = vmatpush1.msra.mxu0 0.0
    %321 = vmatprep.subr.mxu0 0.0
    %322 = vmatpush1.msra.mxu0 0.0
    %323 = vmatprep.subr.mxu0 0.0
    %324 = vmatpush1.msra.mxu0 0.0
    %325 = vmatprep.subr.mxu0 0.0
    %326 = vmatpush1.msra.mxu0 0.0
    %327 = vmatprep.subr.mxu0 0.0
    %328 = vmatpush1.msra.mxu0 0.0
    %329 = vmatprep.subr.mxu0 0.0
    %330 = vmatpush1.msra.mxu0 0.0
    %331 = vmatprep.subr.mxu0 0.0
    %332 = vmatpush1.msra.mxu0 0.0
    %333 = vmatprep.subr.mxu0 0.0
    %334 = vmatpush1.msra.mxu0 0.0
    %335 = vmatprep.subr.mxu0 0.0
    %336 = vmatpush1.msra.mxu0 0.0
    %337 = vmatprep.subr.mxu0 0.0
    %338 = vmatpush1.msra.mxu0 0.0
    %339 = vmatprep.subr.mxu0 0.0
    %340 = vmatpush1.msra.mxu0 0.0
    %341 = vmatprep.mubr.f32.mxu0 0.0
    %342 = vmatmul.mubr.f32.gmra.mrb[0].mxu0 %v275
    %v343 = vpop.f32.mrb[0].mxu0
    %v344 = vadd.f32 %v272, %v343
    %v345 = vpop.f32.mrb[0].mxu0
    %346 = vdwg.mxu0
    %347 = vst [vmem:[#allocation3] sm:$0x1] %v344
    // Predicated region
    $region30: #{tpu_custom_call.1} parent=1 // pred_check
      _
    $region31: #{tpu_custom_call.1} parent=1 // pred_check_branch
      %349 = sbr.rel (0) target = $region33
    $region32: #{tpu_custom_call.1} parent=1 // pred_region
      %s351 = ssub.s32 16, 16
      %352 = vsyncadd [#allocation4], %s351
      %s354 = sshll.u32 [#allocation3], 4
      %s355 = int_to_ptr.vmem [resolvable:$true] %s354
      %357 = dma.vmem_to_hbm [thread:$0]  %s355, 16, %s7, [#allocation4]
    $region33: #{tpu_custom_call.1} parent=1 // pred_fallthru
      _
    // Predicated region
    $region34: #{tpu_custom_call.1} parent=1 // pred_check
      _
    $region35: #{tpu_custom_call.1} parent=1 // pred_check_branch
      %359 = sbr.rel (0) target = $region37
    $region36: #{tpu_custom_call.1} parent=1 // pred_region
      %360 = dma.done [#allocation4], 16
    $region37: #{tpu_custom_call.1} parent=1 // pred_fallthru
      _
    %361 = vsyncpa [#allocation4], 1

</llo_original>
